<compile_context>
chip_gen: v7x
topology: tpu7x:2x2x1
jax: 0.10.0
libtpu: 0.0.40
codegen_flags: <defaults>
</compile_context>

<pallas_src>
import functools

import jax
import jax.numpy as jnp
from jax.experimental import pallas as pl
from jax.experimental.pallas import tpu as pltpu


def _round_up(n, m):
    return ((n + m - 1) // m) * m


def _round_down(n, m):
    return (n // m) * m


def _physical_vmem_bytes():
    try:
        info = pltpu.get_tpu_info()
        v = int(getattr(info, "vmem_capacity_bytes", 0) or 0)
        if v > 0:
            return v
    except Exception:
        pass
    return 64 * 1024 * 1024  # conservative default: v7x per-TensorCore VMEM


def _choose_tiles(batch, classes, itemsize, block_rows, block_cols, vmem_budget_bytes):
    """Pick (row_tile, class_tile) keeping 2x double-buffered logits tiles in budget."""
    max_tile_bytes = max(vmem_budget_bytes // 2, 1 << 20)      # double-buffered x tiles
    target_tile_bytes = min(4 << 20, max_tile_bytes)           # ~1-4 MiB DMA sweet spot
    row_bytes = classes * itemsize

    # Class-dim tile.
    if block_cols is not None:
        tc = classes if block_cols >= classes else max(128, _round_down(block_cols, 128))
        tc = min(tc, classes)
    elif 8 * row_bytes <= target_tile_bytes:
        tc = classes                                           # full rows fit comfortably
    else:
        tc = None                                              # derived after the row tile

    # Row tile.
    if block_rows is not None:
        tb = max(8, _round_up(block_rows, 8))
    elif tc == classes:
        tb = min(2048, max(8, target_tile_bytes // row_bytes), _round_up(batch, 8))
        tb = max(8, _round_down(tb, 8))
        # Give the v7x megacore >= 2 row tiles to shard across its two TensorCores when
        # the whole batch would otherwise collapse to one grid step (harmless on 1-TC
        # v5e/v6e: the extra ~0.35us grid step is negligible at these sizes).
        if batch > 8 and pl.cdiv(batch, tb) == 1:
            tb = _round_up(pl.cdiv(batch, 2), 8)
    else:
        tb = max(8, min(128, _round_up(batch, 8)))

    if tc is None:   # very large vocab: flash-style class tiling
        tc = max(128, _round_down(target_tile_bytes // (tb * itemsize), 128))
        tc = min(tc, _round_up(classes, 128))
        if tc >= classes:
            tc = classes
    return tb, tc


def _label_smoothing_kernel(x_ref, t_ref, out_ref, m_ref, d_ref, mix_ref, *,
                            confidence, smooth_over_c, batch, classes,
                            block_rows, block_cols):
    # x_ref:   (TB, TC) logits tile (any float dtype; upcast here)
    # t_ref:   (TB, 1)  int32 targets (resident across the class axis)
    # out_ref: (1, TB, 1) float32 per-row loss tile (written on the last class tile)
    # m/d/mix: (TB, 1)  float32 online-logsumexp / weighted-sum accumulators
    i = pl.program_id(0)
    k = pl.program_id(1)

    @pl.when(k == 0)
    def _init():
        m_ref[...] = jnp.full(m_ref.shape, -jnp.inf, jnp.float32)
        d_ref[...] = jnp.zeros(d_ref.shape, jnp.float32)
        mix_ref[...] = jnp.zeros(mix_ref.shape, jnp.float32)

    x = x_ref[...].astype(jnp.float32)                               # (TB, TC)
    tgt = t_ref[...]                                                 # (TB, 1) int32

    # Global class index of every lane in this tile.
    gcol = k * block_cols + jax.lax.broadcasted_iota(jnp.int32, x.shape, 1)

    ragged_cols = (classes % block_cols) != 0        # static (Python) condition
    if ragged_cols:
        col_valid = gcol < classes
        x_lse = jnp.where(col_valid, x, -jnp.inf)    # garbage tail columns -> -inf
    else:
        x_lse = x

    # --- online logsumexp across class tiles ---
    m_prev = m_ref[...]
    m_new = jnp.maximum(m_prev, jnp.max(x_lse, axis=-1, keepdims=True))
    alpha = jnp.exp(m_prev - m_new)
    d_ref[...] = alpha * d_ref[...] + jnp.sum(jnp.exp(x_lse - m_new),
                                              axis=-1, keepdims=True)
    m_ref[...] = m_new

    # --- fused weighted sum: smoothing/C * sum(x) + confidence * x[target] ---
    w = jnp.where(gcol == tgt, confidence + smooth_over_c, smooth_over_c)
    xw = x * w
    if ragged_cols:
        xw = jnp.where(col_valid, xw, 0.0)
    mix_ref[...] += jnp.sum(xw, axis=-1, keepdims=True)

    # --- finalize on the last class tile ---
    @pl.when(k == pl.num_programs(1) - 1)
    def _finalize():
        loss = m_ref[...] + jnp.log(d_ref[...]) - mix_ref[...]       # (TB, 1)
        if (batch % block_rows) != 0:
            # Trailing partial row tile: zero the garbage rows (they are also sliced
            # off by the wrapper, but keep the padded output NaN-free).
            row = i * block_rows + jax.lax.broadcasted_iota(jnp.int32, loss.shape, 0)
            loss = jnp.where(row < batch, loss, 0.0)
        out_ref[...] = loss[None, :, :]


def label_smoothing_loss(x, target, smoothing=0.0, *, block_rows=None, block_cols=None,
                         vmem_budget_bytes=None):
    """x: (B, C) float logits; target: (B,) int class ids. Returns (B,) float32 loss."""
    B, C = x.shape
    confidence = 1.0 - smoothing
    smooth_over_c = smoothing / C
    itemsize = jnp.dtype(x.dtype).itemsize

    phys_vmem = _physical_vmem_bytes()
    if vmem_budget_bytes is None:
        # ~48 MiB of x buffers on v7x (64 MiB physical), ~96 MiB on v5e/v6e (128 MiB).
        vmem_budget_bytes = min((phys_vmem * 3) // 4, phys_vmem - (16 << 20))
    vmem_budget_bytes = max(int(vmem_budget_bytes), 2 << 20)

    tb, tc = _choose_tiles(B, C, itemsize, block_rows, block_cols, vmem_budget_bytes)
    num_row_tiles = pl.cdiv(B, tb)
    num_col_tiles = pl.cdiv(C, tc)
    b_pad = num_row_tiles * tb

    # Only the tiny targets array is padded; the (B, C) logits are NOT copied/padded --
    # the trailing partial row tile reads unspecified rows that are masked in-kernel.
    target_2d = target.astype(jnp.int32).reshape(B, 1)
    if b_pad != B:
        target_2d = jnp.pad(target_2d, ((0, b_pad - B), (0, 0)))

    kernel = functools.partial(
        _label_smoothing_kernel,
        confidence=float(confidence),
        smooth_over_c=float(smooth_over_c),
        batch=B, classes=C, block_rows=tb, block_cols=tc)

    # Scoped-VMEM limit: double-buffered logits + lane-padded targets/output buffers
    # + accumulator scratch + slack, clamped to the physical per-core VMEM.
    x_buf = tb * tc * itemsize
    lane_pad_buf = tb * 128 * 4          # (TB, 1) blocks pad the lane dim to 128
    vmem_limit = 2 * x_buf + 7 * lane_pad_buf + (4 << 20)
    vmem_limit = int(min(max(vmem_limit, 32 << 20), phys_vmem - (2 << 20)))

    cost = pl.CostEstimate(
        flops=int(8 * B * C),
        transcendentals=int(B * C),
        bytes_accessed=int(B * C * itemsize + B * 4 + B * 4))

    out = pl.pallas_call(
        kernel,
        out_shape=jax.ShapeDtypeStruct((num_row_tiles, tb, 1), jnp.float32),
        grid=(num_row_tiles, num_col_tiles),
        in_specs=[
            pl.BlockSpec((tb, tc), lambda i, k: (i, k)),   # logits tile
            pl.BlockSpec((tb, 1), lambda i, k: (i, 0)),    # targets (resident over k)
        ],
        out_specs=pl.BlockSpec((1, tb, 1), lambda i, k: (i, 0, 0)),
        scratch_shapes=[
            pltpu.VMEM((tb, 1), jnp.float32),   # running max      m
            pltpu.VMEM((tb, 1), jnp.float32),   # running sum-exp  d
            pltpu.VMEM((tb, 1), jnp.float32),   # running weighted sum
        ],
        compiler_params=pltpu.CompilerParams(
            dimension_semantics=("parallel", "arbitrary"),
            vmem_limit_bytes=vmem_limit),
        cost_estimate=cost,
    )(x, target_2d)
    return out.reshape(-1)[:B]


def _reference(x, target, smoothing):
    logprobs = jax.nn.log_softmax(x.astype(jnp.float32), axis=-1)
    nll = -jnp.take_along_axis(logprobs, target[:, None].astype(jnp.int32), axis=-1)[:, 0]
    smooth = -jnp.mean(logprobs, axis=-1)
    return (1.0 - smoothing) * nll + smoothing * smooth


if __name__ == "__main__":
    key = jax.random.PRNGKey(0)
    k1, k2, k3, k4, k5, k6 = jax.random.split(key, 6)
    smoothing = 0.1

    # Case 1: tiny single-tile problem (B=8, C=32), f32.
    B, C = 8, 32
    x = jax.random.normal(k1, (B, C), dtype=jnp.float32)
    tgt = jax.random.randint(k2, (B,), 0, C, dtype=jnp.int32)
    out = jax.block_until_ready(label_smoothing_loss(x, tgt, smoothing=smoothing))
    ref = _reference(x, tgt, smoothing)
    assert out.shape == (B,)
    assert jnp.allclose(out, ref, atol=1e-4, rtol=1e-5), (out, ref)

    # Case 2: ragged batch, bf16 logits kept un-precast; exercises the un-padded
    # trailing row tile (in-kernel row mask) and the >=2-row-tile megacore split.
    B2, C2 = 200, 256
    x2 = jax.random.normal(k3, (B2, C2), dtype=jnp.bfloat16)
    tgt2 = jax.random.randint(k4, (B2,), 0, C2, dtype=jnp.int32)
    out2 = jax.block_until_ready(label_smoothing_loss(x2, tgt2, smoothing=smoothing))
    ref2 = _reference(x2, tgt2, smoothing)
    assert out2.shape == (B2,)
    assert jnp.allclose(out2, ref2, atol=1e-4, rtol=1e-4), (out2, ref2)

    # Case 3: forced class-dimension (flash-style) tiling with ragged row AND class
    # tails; exercises the online-logsumexp path used for very large vocabularies.
    B3, C3 = 24, 320
    x3 = jax.random.normal(k5, (B3, C3), dtype=jnp.float32)
    tgt3 = jax.random.randint(k6, (B3,), 0, C3, dtype=jnp.int32)
    out3 = jax.block_until_ready(
        label_smoothing_loss(x3, tgt3, smoothing=smoothing, block_rows=16, block_cols=128))
    ref3 = _reference(x3, tgt3, smoothing)
    assert out3.shape == (B3,)
    assert jnp.allclose(out3, ref3, atol=1e-4, rtol=1e-5), (out3, ref3)

    print("KERNEL_OK")
</pallas_src>

<mosaic_0001>
module attributes {stable_mosaic.version = 11 : i64} {
  func.func @_label_smoothing_kernel(%arg0: i32, %arg1: i32, %arg2: memref<8x32xf32, #tpu.memory_space<vmem>>, %arg3: memref<8x1xi32, #tpu.memory_space<vmem>>, %arg4: memref<1x8x1xf32, #tpu.memory_space<vmem>>, %arg5: memref<8x1xf32, #tpu.memory_space<vmem>>, %arg6: memref<8x1xf32, #tpu.memory_space<vmem>>, %arg7: memref<8x1xf32, #tpu.memory_space<vmem>>) attributes {dimension_semantics = [#tpu.dimension_semantics<parallel>, #tpu.dimension_semantics<arbitrary>], iteration_bounds = array<i64: 1, 1>, scalar_prefetch = 0 : i64, scratch_operands = 3 : i64, tpu.core_type = #tpu.core_type<tc>, window_params = [{transform_indices = @transform_0, window_bounds = array<i64: 8, 32>}, {transform_indices = @transform_1, window_bounds = array<i64: 8, 1>}, {transform_indices = @transform_2, window_bounds = array<i64: 1, 8, 1>}]} {
    %c0_i32 = arith.constant 0 : i32
    %0 = arith.cmpi eq, %arg1, %c0_i32 : i32
    %1 = arith.extui %0 : i1 to i32
    %c0_i32_0 = arith.constant 0 : i32
    %2 = arith.cmpi ne, %1, %c0_i32_0 : i32
    scf.if %2 {
      %cst_22 = arith.constant 0xFF800000 : f32
      %39 = vector.broadcast %cst_22 : f32 to vector<8x1xf32>
      %c0_23 = arith.constant 0 : index
      %c0_24 = arith.constant 0 : index
      %40 = vector.load %arg5[%c0_23, %c0_24] : memref<8x1xf32, #tpu.memory_space<vmem>>, vector<8x1xf32>
      tpu.vector_store %arg5[%c0_23, %c0_24], %39 {strides = array<i32>} : memref<8x1xf32, #tpu.memory_space<vmem>>, vector<8x1xf32>,
      %cst_25 = arith.constant 0.000000e+00 : f32
      %41 = vector.broadcast %cst_25 : f32 to vector<8x1xf32>
      %c0_26 = arith.constant 0 : index
      %c0_27 = arith.constant 0 : index
      %42 = vector.load %arg6[%c0_26, %c0_27] : memref<8x1xf32, #tpu.memory_space<vmem>>, vector<8x1xf32>
      tpu.vector_store %arg6[%c0_26, %c0_27], %41 {strides = array<i32>} : memref<8x1xf32, #tpu.memory_space<vmem>>, vector<8x1xf32>,
      %cst_28 = arith.constant 0.000000e+00 : f32
      %43 = vector.broadcast %cst_28 : f32 to vector<8x1xf32>
      %c0_29 = arith.constant 0 : index
      %c0_30 = arith.constant 0 : index
      %44 = vector.load %arg7[%c0_29, %c0_30] : memref<8x1xf32, #tpu.memory_space<vmem>>, vector<8x1xf32>
      tpu.vector_store %arg7[%c0_29, %c0_30], %43 {strides = array<i32>} : memref<8x1xf32, #tpu.memory_space<vmem>>, vector<8x1xf32>,
    } else {
    }
    %c0 = arith.constant 0 : index
    %c0_1 = arith.constant 0 : index
    %3 = vector.load %arg2[%c0, %c0_1] : memref<8x32xf32, #tpu.memory_space<vmem>>, vector<8x32xf32>
    %c0_2 = arith.constant 0 : index
    %c0_3 = arith.constant 0 : index
    %4 = vector.load %arg3[%c0_2, %c0_3] : memref<8x1xi32, #tpu.memory_space<vmem>>, vector<8x1xi32>
    %c32_i32 = arith.constant 32 : i32
    %5 = arith.muli %arg1, %c32_i32 : i32
    %6 = tpu.iota {dimensions = array<i32: 1>} : vector<8x32xi32>
    %7 = vector.broadcast %5 : i32 to vector<8x32xi32>
    %8 = arith.addi %7, %6 : vector<8x32xi32>
    %c0_4 = arith.constant 0 : index
    %c0_5 = arith.constant 0 : index
    %9 = vector.load %arg5[%c0_4, %c0_5] : memref<8x1xf32, #tpu.memory_space<vmem>>, vector<8x1xf32>
    %cst = arith.constant dense<0xFF800000> : vector<8xf32>
    %10 = vector.multi_reduction <maximumf>, %3, %cst [1] : vector<8x32xf32> to vector<8xf32>
    %11 = vector.shape_cast %10 : vector<8xf32> to vector<8x1xf32>
    %12 = arith.maximumf %9, %11 : vector<8x1xf32>
    %13 = arith.subf %9, %12 : vector<8x1xf32>
    %14 = math.exp %13 : vector<8x1xf32>
    %c0_6 = arith.constant 0 : index
    %c0_7 = arith.constant 0 : index
    %15 = vector.load %arg6[%c0_6, %c0_7] : memref<8x1xf32, #tpu.memory_space<vmem>>, vector<8x1xf32>
    %16 = arith.mulf %14, %15 : vector<8x1xf32>
    %17 = vector.broadcast %12 : vector<8x1xf32> to vector<8x32xf32>
    %18 = arith.subf %3, %17 : vector<8x32xf32>
    %19 = math.exp %18 : vector<8x32xf32>
    %cst_8 = arith.constant dense<0.000000e+00> : vector<8xf32>
    %20 = vector.multi_reduction <add>, %19, %cst_8 [1] : vector<8x32xf32> to vector<8xf32>
    %21 = vector.shape_cast %20 : vector<8xf32> to vector<8x1xf32>
    %22 = arith.addf %16, %21 : vector<8x1xf32>
    %c0_9 = arith.constant 0 : index
    %c0_10 = arith.constant 0 : index
    %23 = vector.load %arg6[%c0_9, %c0_10] : memref<8x1xf32, #tpu.memory_space<vmem>>, vector<8x1xf32>
    tpu.vector_store %arg6[%c0_9, %c0_10], %22 {strides = array<i32>} : memref<8x1xf32, #tpu.memory_space<vmem>>, vector<8x1xf32>,
    %c0_11 = arith.constant 0 : index
    %c0_12 = arith.constant 0 : index
    %24 = vector.load %arg5[%c0_11, %c0_12] : memref<8x1xf32, #tpu.memory_space<vmem>>, vector<8x1xf32>
    tpu.vector_store %arg5[%c0_11, %c0_12], %12 {strides = array<i32>} : memref<8x1xf32, #tpu.memory_space<vmem>>, vector<8x1xf32>,
    %25 = vector.broadcast %4 : vector<8x1xi32> to vector<8x32xi32>
    %26 = arith.cmpi eq, %8, %25 : vector<8x32xi32>
    %cst_13 = arith.constant 0.903124988 : f32
    %cst_14 = arith.constant 3.125000e-03 : f32
    %27 = vector.broadcast %cst_13 : f32 to vector<8x32xf32>
    %28 = vector.broadcast %cst_14 : f32 to vector<8x32xf32>
    %29 = arith.select %26, %27, %28 : vector<8x32xi1>, vector<8x32xf32>
    %30 = arith.mulf %3, %29 : vector<8x32xf32>
    %c0_15 = arith.constant 0 : index
    %c0_16 = arith.constant 0 : index
    %31 = vector.load %arg7[%c0_15, %c0_16] : memref<8x1xf32, #tpu.memory_space<vmem>>, vector<8x1xf32>
    %cst_17 = arith.constant dense<0.000000e+00> : vector<8xf32>
    %32 = vector.multi_reduction <add>, %30, %cst_17 [1] : vector<8x32xf32> to vector<8xf32>
    %33 = vector.shape_cast %32 : vector<8xf32> to vector<8x1xf32>
    %34 = arith.addf %31, %33 : vector<8x1xf32>
    %c0_18 = arith.constant 0 : index
    %c0_19 = arith.constant 0 : index
    %35 = vector.load %arg7[%c0_18, %c0_19] : memref<8x1xf32, #tpu.memory_space<vmem>>, vector<8x1xf32>
    tpu.vector_store %arg7[%c0_18, %c0_19], %34 {strides = array<i32>} : memref<8x1xf32, #tpu.memory_space<vmem>>, vector<8x1xf32>,
    %c0_i32_20 = arith.constant 0 : i32
    %36 = arith.cmpi eq, %arg1, %c0_i32_20 : i32
    %37 = arith.extui %36 : i1 to i32
    %c0_i32_21 = arith.constant 0 : i32
    %38 = arith.cmpi ne, %37, %c0_i32_21 : i32
    scf.if %38 {
      %c0_22 = arith.constant 0 : index
      %c0_23 = arith.constant 0 : index
      %39 = vector.load %arg5[%c0_22, %c0_23] : memref<8x1xf32, #tpu.memory_space<vmem>>, vector<8x1xf32>
      %c0_24 = arith.constant 0 : index
      %c0_25 = arith.constant 0 : index
      %40 = vector.load %arg6[%c0_24, %c0_25] : memref<8x1xf32, #tpu.memory_space<vmem>>, vector<8x1xf32>
      %41 = math.log %40 : vector<8x1xf32>
      %42 = arith.addf %39, %41 : vector<8x1xf32>
      %c0_26 = arith.constant 0 : index
      %c0_27 = arith.constant 0 : index
      %43 = vector.load %arg7[%c0_26, %c0_27] : memref<8x1xf32, #tpu.memory_space<vmem>>, vector<8x1xf32>
      %44 = arith.subf %42, %43 : vector<8x1xf32>
      %45 = vector.shape_cast %44 : vector<8x1xf32> to vector<1x8x1xf32>
      %c0_28 = arith.constant 0 : index
      %c0_29 = arith.constant 0 : index
      %c0_30 = arith.constant 0 : index
      %46 = vector.load %arg4[%c0_28, %c0_29, %c0_30] : memref<1x8x1xf32, #tpu.memory_space<vmem>>, vector<1x8x1xf32>
      tpu.vector_store %arg4[%c0_28, %c0_29, %c0_30], %45 {strides = array<i32>} : memref<1x8x1xf32, #tpu.memory_space<vmem>>, vector<1x8x1xf32>,
    } else {
    }
    return
  }
  func.func @transform_0(%arg0: i32, %arg1: i32) -> (i32, i32) {
    %c0_i32 = arith.constant 0 : i32
    return %arg0, %arg1 : i32, i32
  }
  func.func @transform_1(%arg0: i32, %arg1: i32) -> (i32, i32) {
    %c0_i32 = arith.constant 0 : i32
    %c0_i32_0 = arith.constant 0 : i32
    return %arg0, %c0_i32 : i32, i32
  }
  func.func @transform_2(%arg0: i32, %arg1: i32) -> (i32, i32, i32) {
    %c0_i32 = arith.constant 0 : i32
    %c0_i32_0 = arith.constant 0 : i32
    %c0_i32_1 = arith.constant 0 : i32
    return %arg0, %c0_i32, %c0_i32_0 : i32, i32, i32
  }
}

</mosaic_0001>

<llo_original>
// kernel: tpu_custom_call.1
$region0: #{tpu_custom_call.1}
  #allocation0 [shape = 'u32[]', space=smem, size = 0x4, offset = 0x4, fixed_abs, tag = 'smem constant byte address 0x4 - core index']
  #allocation1 [shape = 'u32[144,128]{1,0:T(1,128)}', space=vmem, size = 0x12000, scoped, tag = 'internal scratch']
  #allocation2 [shape = 'f32[8,1]{1,0:T(8,128)}', space=vmem, size = 0x1000, scoped, tag = 'scratch operand']
  #allocation3 [shape = 'f32[8,1]{1,0:T(8,128)}', space=vmem, size = 0x1000, scoped, tag = 'scratch operand']
  #allocation4 [shape = 'f32[8,1]{1,0:T(8,128)}', space=vmem, size = 0x1000, scoped, tag = 'scratch operand']
  %s0 = inlined_call_operand.vmem [shape: f32[8,32], index: 0, kind: input, shape index: {}]
  %s1 = inlined_call_operand.vmem [shape: s32[8,1], index: 1, kind: input, shape index: {}]
  %s2 = inlined_call_operand.vmem [shape: f32[1,8,1], index: 2, kind: output, shape index: {}]
  %s3 = sld [smem:[#allocation0]]
  $region26: #{tpu_custom_call.1} parent=0
    _
  %s5 = ssub.s32 1, %s3
  %s6 = scalar_select 0, %s5, %s3
  // Predicated region
  $region2: #{tpu_custom_call.1} parent=0 // pred_check
    _
  $region3: #{tpu_custom_call.1} parent=0 // pred_check_branch
    %8 = sbr.rel (0) target = $region5
  $region4: #{tpu_custom_call.1} parent=0 // pred_region
    _
  $region5: #{tpu_custom_call.1} parent=0 // pred_fallthru
    _
  // Predicated region
  $region6: #{tpu_custom_call.1} parent=0 // pred_check
    _
  $region7: #{tpu_custom_call.1} parent=0 // pred_check_branch
    %10 = sbr.rel (0) target = $region9
  $region8: #{tpu_custom_call.1} parent=0 // pred_region
    _
  $region9: #{tpu_custom_call.1} parent=0 // pred_fallthru
    _
  %p11 = scmp.eq.s32.totalorder 0, 0
  // Predicated region
  $region10: #{tpu_custom_call.1} parent=0 // pred_check
    %p12 = pneg %p11
  $region11: #{tpu_custom_call.1} parent=0 // pred_check_branch
    %14 = sbr.rel (%p12) target = $region13
  $region12: #{tpu_custom_call.1} parent=0 // pred_region
    %vm15 = vcmask 7168
    %16 = vst.msk [vmem:[#allocation2] sm:$0xff] %vm15, -inf
    %17 = vst.msk [vmem:[#allocation3] sm:$0xff] %vm15, 0.0
    %18 = vst.msk [vmem:[#allocation4] sm:$0xff] %vm15, 0.0
  $region13: #{tpu_custom_call.1} parent=0 // pred_fallthru
    _
  %v19 = vld [vmem:[%s0] sm:$0xff]
  %v20 = vld [vmem:[%s1] sm:$0xff]
  %s21 = smul.u32 0, 32
  %v22 = vlaneseq
  %v23 = vand.u32 %v22, 127
  %v24 = vstv %s21
  %v25 = vadd.s32 %v24, %v23
  %v26 = vld [vmem:[#allocation2] sm:$0xff]
  %vm27 = vcmask 261120
  %v28 = vsel %vm27, %v19, -inf
  %29 = vmax.xlane.f32.xlu0 %v28
  %v30 = vpop.xlane.xlu0 %29
  %v31 = vmax.f32 %v26, %v30
  %v32 = vsub.f32 %v26, %v31
  %v33 = vmul.f32 %v32, 1.442695
  %v34 = vpow.pop %v33
  %v35 = vld [vmem:[#allocation3] sm:$0xff]
  %v36 = vmul.f32 %v34, %v35
  %38 = vset.pattern.permute.xlu0 0
  %39 = vperm.xlu0 %38, %v31
  %v40 = vpop.permute.xlu0 %39
  %v42 = vsub.f32 %v19, %v40
  %v43 = vmul.f32 %v42, 1.442695
  %v44 = vpow.pop %v43
  %v45 = vsel %vm27, %v44, 0.0
  %46 = vadd.xlane.f32.xlu0 %v45
  %v47 = vpop.xlane.xlu0 %46
  %v48 = vadd.f32 %v36, %v47
  %vm49 = vcmask 7168
  %50 = vst.msk [vmem:[#allocation3] sm:$0xff] %vm49, %v48
  %51 = vst.msk [vmem:[#allocation2] sm:$0xff] %vm49, %v31
  %52 = vset.pattern.permute.xlu0 0
  %53 = vperm.xlu0 %52, %v20
  %v54 = vpop.permute.xlu0 %53
  %vm55 = vcmp.eq.s32.totalorder %v25, %v54
  %v56 = vsel %vm55, 0.903125, 0.003125
  %v57 = vmul.f32 %v19, %v56
  %v58 = vld [vmem:[#allocation4] sm:$0xff]
  %v59 = vsel %vm27, %v57, 0.0
  %60 = vadd.xlane.f32.xlu0 %v59
  %v61 = vpop.xlane.xlu0 %60
  %v62 = vadd.f32 %v58, %v61
  %63 = vst.msk [vmem:[#allocation4] sm:$0xff] %vm49, %v62
  // Predicated region
  $region14: #{tpu_custom_call.1} parent=0 // pred_check
    %p64 = pneg %p11
  $region15: #{tpu_custom_call.1} parent=0 // pred_check_branch
    %66 = sbr.rel (%p64) target = $region17
  $region16: #{tpu_custom_call.1} parent=0 // pred_region
    %v67 = vld [vmem:[#allocation2] sm:$0xff]
    %v68 = vld [vmem:[#allocation3] sm:$0xff]
    %v69 = vlog2.pop %v68
    %v70 = vmul.f32 %v69, 0.6931472
    %v71 = vadd.f32 %v67, %v70
    %v72 = vld [vmem:[#allocation4] sm:$0xff]
    %v73 = vsub.f32 %v71, %v72
    %74 = vst.msk [vmem:[%s2] sm:$0xff] %vm49, %v73
  $region17: #{tpu_custom_call.1} parent=0 // pred_fallthru
    _
  // Predicated region
  $region18: #{tpu_custom_call.1} parent=0 // pred_check
    _
  $region19: #{tpu_custom_call.1} parent=0 // pred_check_branch
    %76 = sbr.rel (0) target = $region21
  $region20: #{tpu_custom_call.1} parent=0 // pred_region
    _
  $region21: #{tpu_custom_call.1} parent=0 // pred_fallthru
    _
  // Predicated region
  $region22: #{tpu_custom_call.1} parent=0 // pred_check
    _
  $region23: #{tpu_custom_call.1} parent=0 // pred_check_branch
    %78 = sbr.rel (0) target = $region25
  $region24: #{tpu_custom_call.1} parent=0 // pred_region
    _
  $region25: #{tpu_custom_call.1} parent=0 // pred_fallthru
    _

</llo_original>
